<compile_context>
chip_gen: v5e
topology: v5e:2x2
jax: 0.10.0
libtpu: 0.0.40
codegen_flags: <defaults>
</compile_context>

<pallas_src>
import math
from functools import partial

import jax
import jax.numpy as jnp
from jax.experimental import pallas as pl
from jax.experimental.pallas import tpu as pltpu


_LANES = 128
_MAX_ROWS_PER_TILE = 256  # 256 rows x 128 lanes = 32768 spatial elems / tile
                          # f32 output block = 20*256*128*4 B = 2.5 MiB
                          # (in + out) * 2 buffers ~= 5.5 MiB  (safe on v5e/v6e/v7x)


def _nerf_embed_kernel(x_ref, o_ref, *, n_layers: int):
    # x_ref: (1, C, T, 128)   o_ref: (1, 2*C*n_layers, T, 128)
    x = x_ref[...].astype(jnp.float32)

    # Transcendentals once (EUP), remaining octaves via VPU FMAs:
    #   sin(2a) = 2*sin(a)*cos(a),   cos(2a) = cos(a)^2 - sin(a)^2
    s = jnp.sin(jnp.float32(math.pi) * x)
    c = jnp.cos(jnp.float32(math.pi) * x)

    planes = []
    for i in range(n_layers):           # small static unroll (n_layers ~ 5)
        planes.append(s)
        planes.append(c)
        if i + 1 < n_layers:
            s, c = 2.0 * s * c, c * c - s * s

    # One dense, fully packed store of the whole output tile.
    out = jnp.concatenate(planes, axis=1)
    o_ref[...] = out.astype(o_ref.dtype)


def nerf_embedding(spatial_coords: jax.Array, n_layers: int = 5) -> jax.Array:
    """Pallas equivalent of NeRF_embedding.forward.

    Args:
        spatial_coords: [B, 2, H, W] float array.
    Returns:
        [B, 4 * n_layers, H, W] embeddings, channel order
        [sin(2^0*pi*x) (C ch), cos(2^0*pi*x) (C ch), sin(2^1*pi*x), ...].
    """
    B, C, H, W = spatial_coords.shape
    C_out = 2 * C * n_layers
    HW = H * W

    # Lane/sublane-friendly 2-D spatial layout: HW -> (n_rows, 128), padded.
    n_rows_raw = pl.cdiv(HW, _LANES)
    if n_rows_raw <= _MAX_ROWS_PER_TILE:
        t_rows = n_rows_raw              # single spatial tile == full dim (allowed)
        n_rows = n_rows_raw
    else:
        t_rows = _MAX_ROWS_PER_TILE      # multiple of 8 -> dense sublanes
        n_rows = pl.cdiv(n_rows_raw, t_rows) * t_rows
    HW_pad = n_rows * _LANES

    x = spatial_coords.reshape(B, C, HW)
    if HW_pad != HW:
        x = jnp.pad(x, ((0, 0), (0, 0), (0, HW_pad - HW)))
    x = x.reshape(B, C, n_rows, _LANES)

    grid = (B, n_rows // t_rows)

    out = pl.pallas_call(
        partial(_nerf_embed_kernel, n_layers=n_layers),
        out_shape=jax.ShapeDtypeStruct((B, C_out, n_rows, _LANES),
                                       spatial_coords.dtype),
        grid_spec=pltpu.PrefetchScalarGridSpec(
            num_scalar_prefetch=0,
            grid=grid,
            in_specs=[pl.BlockSpec((1, C, t_rows, _LANES),
                                   lambda b, t: (b, 0, t, 0))],
            out_specs=pl.BlockSpec((1, C_out, t_rows, _LANES),
                                   lambda b, t: (b, 0, t, 0)),
        ),
        compiler_params=pltpu.CompilerParams(
            dimension_semantics=("parallel", "parallel")),
    )(x)

    out = out.reshape(B, C_out, HW_pad)
    if HW_pad != HW:
        out = out[:, :, :HW]
    return out.reshape(B, C_out, H, W)


def _reference(spatial_coords: jax.Array, n_layers: int = 5) -> jax.Array:
    embs = []
    for i in range(n_layers):
        embs.append(jnp.sin((2.0 ** i) * math.pi * spatial_coords))
        embs.append(jnp.cos((2.0 ** i) * math.pi * spatial_coords))
    return jnp.concatenate(embs, axis=1)


if __name__ == "__main__":
    key = jax.random.PRNGKey(0)

    # Module expects 2 spatial-coordinate channels.
    B, C, H, W = 2, 2, 16, 16
    x = jax.random.uniform(key, (B, C, H, W), dtype=jnp.float32)

    out = nerf_embedding(x, n_layers=5)
    out = jax.block_until_ready(out)
    ref = _reference(x, n_layers=5)
    assert out.shape == (B, 20, H, W), out.shape
    # atol slightly loosened vs direct-sin reference: double-angle recurrence
    # accumulates a few ulps over 4 doublings (worst case ~2e-5 in f32).
    assert jnp.allclose(out, ref, atol=1e-4, rtol=1e-5), "mismatch vs reference"

    # Second tiny case exercising HW not divisible by 128 (pad + slice path).
    key2 = jax.random.PRNGKey(1)
    x2 = jax.random.uniform(key2, (1, 2, 10, 12), dtype=jnp.float32)
    out2 = jax.block_until_ready(nerf_embedding(x2, n_layers=5))
    ref2 = _reference(x2, n_layers=5)
    assert out2.shape == (1, 20, 10, 12), out2.shape
    assert jnp.allclose(out2, ref2, atol=1e-4, rtol=1e-5), "mismatch (padded case)"

    print("KERNEL_OK")
</pallas_src>

<mosaic_0001>
module attributes {stable_mosaic.version = 11 : i64} {
  func.func @_nerf_embed_kernel(%arg0: i32, %arg1: i32, %arg2: memref<1x2x2x128xf32, #tpu.memory_space<vmem>>, %arg3: memref<1x20x2x128xf32, #tpu.memory_space<vmem>>) attributes {dimension_semantics = [#tpu.dimension_semantics<parallel>, #tpu.dimension_semantics<parallel>], iteration_bounds = array<i64: 2, 1>, scalar_prefetch = 0 : i64, scratch_operands = 0 : i64, tpu.core_type = #tpu.core_type<tc>, window_params = [{transform_indices = @transform_0, window_bounds = array<i64: 1, 2, 2, 128>}, {transform_indices = @transform_1, window_bounds = array<i64: 1, 20, 2, 128>}]} {
    %c0 = arith.constant 0 : index
    %c0_0 = arith.constant 0 : index
    %c0_1 = arith.constant 0 : index
    %c0_2 = arith.constant 0 : index
    %0 = vector.load %arg2[%c0, %c0_0, %c0_1, %c0_2] : memref<1x2x2x128xf32, #tpu.memory_space<vmem>>, vector<1x2x2x128xf32>
    %cst = arith.constant 3.14159274 : f32
    %1 = vector.broadcast %cst : f32 to vector<1x2x2x128xf32>
    %2 = arith.mulf %1, %0 : vector<1x2x2x128xf32>
    %3 = math.sin %2 : vector<1x2x2x128xf32>
    %cst_3 = arith.constant 3.14159274 : f32
    %4 = vector.broadcast %cst_3 : f32 to vector<1x2x2x128xf32>
    %5 = arith.mulf %4, %0 : vector<1x2x2x128xf32>
    %6 = math.cos %5 : vector<1x2x2x128xf32>
    %cst_4 = arith.constant 2.000000e+00 : f32
    %7 = vector.broadcast %cst_4 : f32 to vector<1x2x2x128xf32>
    %8 = arith.mulf %7, %3 : vector<1x2x2x128xf32>
    %9 = arith.mulf %8, %6 : vector<1x2x2x128xf32>
    %10 = arith.mulf %6, %6 : vector<1x2x2x128xf32>
    %11 = arith.mulf %3, %3 : vector<1x2x2x128xf32>
    %12 = arith.subf %10, %11 : vector<1x2x2x128xf32>
    %cst_5 = arith.constant 2.000000e+00 : f32
    %13 = vector.broadcast %cst_5 : f32 to vector<1x2x2x128xf32>
    %14 = arith.mulf %13, %9 : vector<1x2x2x128xf32>
    %15 = arith.mulf %14, %12 : vector<1x2x2x128xf32>
    %16 = arith.mulf %12, %12 : vector<1x2x2x128xf32>
    %17 = arith.mulf %9, %9 : vector<1x2x2x128xf32>
    %18 = arith.subf %16, %17 : vector<1x2x2x128xf32>
    %cst_6 = arith.constant 2.000000e+00 : f32
    %19 = vector.broadcast %cst_6 : f32 to vector<1x2x2x128xf32>
    %20 = arith.mulf %19, %15 : vector<1x2x2x128xf32>
    %21 = arith.mulf %20, %18 : vector<1x2x2x128xf32>
    %22 = arith.mulf %18, %18 : vector<1x2x2x128xf32>
    %23 = arith.mulf %15, %15 : vector<1x2x2x128xf32>
    %24 = arith.subf %22, %23 : vector<1x2x2x128xf32>
    %cst_7 = arith.constant 2.000000e+00 : f32
    %25 = vector.broadcast %cst_7 : f32 to vector<1x2x2x128xf32>
    %26 = arith.mulf %25, %21 : vector<1x2x2x128xf32>
    %27 = arith.mulf %26, %24 : vector<1x2x2x128xf32>
    %28 = arith.mulf %24, %24 : vector<1x2x2x128xf32>
    %29 = arith.mulf %21, %21 : vector<1x2x2x128xf32>
    %30 = arith.subf %28, %29 : vector<1x2x2x128xf32>
    %31 = tpu.concatenate %3, %6, %9, %12, %15, %18, %21, %24, %27, %30 in 1 : vector<1x2x2x128xf32>, vector<1x2x2x128xf32>, vector<1x2x2x128xf32>, vector<1x2x2x128xf32>, vector<1x2x2x128xf32>, vector<1x2x2x128xf32>, vector<1x2x2x128xf32>, vector<1x2x2x128xf32>, vector<1x2x2x128xf32>, vector<1x2x2x128xf32> -> vector<1x20x2x128xf32>
    %c0_8 = arith.constant 0 : index
    %c0_9 = arith.constant 0 : index
    %c0_10 = arith.constant 0 : index
    %c0_11 = arith.constant 0 : index
    %32 = vector.load %arg3[%c0_8, %c0_9, %c0_10, %c0_11] : memref<1x20x2x128xf32, #tpu.memory_space<vmem>>, vector<1x20x2x128xf32>
    tpu.vector_store %arg3[%c0_8, %c0_9, %c0_10, %c0_11], %31 {strides = array<i32>} : memref<1x20x2x128xf32, #tpu.memory_space<vmem>>, vector<1x20x2x128xf32>,
    return
  }
  func.func @transform_0(%arg0: i32, %arg1: i32) -> (i32, i32, i32, i32) {
    %c0_i32 = arith.constant 0 : i32
    %c0_i32_0 = arith.constant 0 : i32
    %c0_i32_1 = arith.constant 0 : i32
    return %arg0, %c0_i32, %arg1, %c0_i32_0 : i32, i32, i32, i32
  }
  func.func @transform_1(%arg0: i32, %arg1: i32) -> (i32, i32, i32, i32) {
    %c0_i32 = arith.constant 0 : i32
    %c0_i32_0 = arith.constant 0 : i32
    %c0_i32_1 = arith.constant 0 : i32
    return %arg0, %c0_i32, %arg1, %c0_i32_0 : i32, i32, i32, i32
  }
}

</mosaic_0001>

<llo_original>
// kernel: tpu_custom_call.1
$region0: #{tpu_custom_call.1}
  #allocation0 [shape = 'u32[]', space=smem, size = 0x4, offset = 0x4, fixed_abs, tag = 'smem constant byte address 0x4 - core index']
  #allocation1 [shape = 'u32[72,128]{1,0:T(1,128)}', space=vmem, size = 0x9000, scoped, tag = 'internal scratch']
  %s0 = inlined_call_operand.hbm [shape: f32[2,2,2,128], index: 0, kind: input, shape index: {}]
  %s1 = inlined_call_operand.hbm [shape: f32[2,20,2,128], index: 1, kind: output, shape index: {}]
  %s2 = sld [smem:[#allocation0]]
  $region41: #{tpu_custom_call.1} parent=0
    _
  %s4 = ssub.s32 1, %s2
  %s5 = scalar_select 0, %s4, %s2
  $region1: #{tpu_custom_call.1} parent=0
    #allocation2 [shape = 'u8[4096]{0}', space=vmem, size = 0x1000, scoped, tag = 'input window, operand 0']
    #allocation3 [shape = 's32[2]{0}', space=sflag, size = 0x8, scoped, tag = 'scoped memory for tpu_custom_call.1']
    #allocation4 [shape = 's32[2]{0}', space=sflag, size = 0x8, scoped, tag = 'scoped memory for tpu_custom_call.1']
    #allocation5 [shape = 'u8[40960]{0}', space=vmem, size = 0xa000, scoped, tag = 'output window, operand 0']
    %6 = vsyncpa [#allocation3], 0
    %s7 = scalar_lea.sflag [#allocation3], 1
    %8 = vsyncpa %s7, 0
    %9 = vsyncpa [#allocation4], 0
    %s10 = scalar_lea.sflag [#allocation4], 1
    %11 = vsyncpa %s10, 0
    loop: start=0, step=1, limit=4
    $region2: #{tpu_custom_call.1} parent=1 // loop_pre_header
      _
    $region3: #{tpu_custom_call.1} parent=1 // loop_header
      %s13 = sphi 0, %s17
      %p14 = scmp.ge.s32.totalorder %s13, 4
      %s20 = sphi 0, %s32
      %s21 = sphi 0, %s28
      %s22 = sphi 0, %s20
      %s23 = sphi 0, %s21
      %s24 = sphi 0, %s22
      %s25 = sphi 0, %s23
      %s37 = sphi 0, %s39
      %s40 = sphi 0, %s37
      %s41 = sphi 0, %s40
      %s57 = sphi 0, %s41
      %s65 = sphi 0, %s67
      %s68 = sphi 0, %s65
      %s69 = sphi 0, %s68
      %s85 = sphi 0, %s69
    $region4: #{tpu_custom_call.1} parent=1 // loop_header_branch
      %16 = sbr.rel (%p14) target = $region8
    $region5: #{tpu_custom_call.1} parent=1 // loop_body
      %s18 = ssub.s32 %s13, 1
      %s19 = ssub.s32 %s13, 2
      %s26 = sadd.s32 1, %s21
      %p27 = scmp.ge.s32.totalorder %s26, 1
      %s28 = scalar_select %p27, 0, %s26
      %s29 = sadd.s32 1, %s20
      %s30 = scalar_select %p27, %s29, %s20
      %p31 = scmp.ge.s32.totalorder %s30, 2
      %s32 = scalar_select %p31, 0, %s30
      %s33 = ssub.s32 %s20, %s32
      %s34 = ssub.s32 %s21, %s28
      %s35 = sor.u32 %s33, %s34
      %p36 = scmp.eq.s32.totalorder %s35, 0
      %s38 = sadd.s32 %s37, 1
      %s39 = scalar_select %p36, %s37, %s38
      %p42 = pneg %p36
      %p43 = scmp.eq.s32.totalorder %s13, 1
      %p44 = por %p42, %p43
      %p45 = scmp.ne.s32.totalorder %s37, %s40
      %p46 = scmp.eq.s32.totalorder %s13, 0
      %p47 = por %p45, %p46
      %p48 = scmp.ne.s32.totalorder %s37, %s40
      %p49 = scmp.eq.s32.totalorder %s18, 1
      %p50 = por %p48, %p49
      %p51 = scmp.ne.s32.totalorder %s40, %s41
      %p52 = scmp.eq.s32.totalorder %s18, 0
      %p53 = por %p51, %p52
      %p54 = scmp.ne.s32.totalorder %s40, %s41
      %p55 = scmp.eq.s32.totalorder %s19, 1
      %p56 = por %p54, %p55
      %p58 = scmp.ne.s32.totalorder %s41, %s57
      %p59 = scmp.eq.s32.totalorder %s19, 0
      %p60 = por %p58, %p59
      %s61 = ssub.s32 %s20, %s32
      %s62 = ssub.s32 %s21, %s28
      %s63 = sor.u32 %s61, %s62
      %p64 = scmp.eq.s32.totalorder %s63, 0
      %s66 = sadd.s32 %s65, 1
      %s67 = scalar_select %p64, %s65, %s66
      %p70 = pneg %p64
      %p71 = scmp.eq.s32.totalorder %s13, 1
      %p72 = por %p70, %p71
      %p73 = scmp.ne.s32.totalorder %s65, %s68
      %p74 = scmp.eq.s32.totalorder %s13, 0
      %p75 = por %p73, %p74
      %p76 = scmp.ne.s32.totalorder %s65, %s68
      %p77 = scmp.eq.s32.totalorder %s18, 1
      %p78 = por %p76, %p77
      %p79 = scmp.ne.s32.totalorder %s68, %s69
      %p80 = scmp.eq.s32.totalorder %s18, 0
      %p81 = por %p79, %p80
      %p82 = scmp.ne.s32.totalorder %s68, %s69
      %p83 = scmp.eq.s32.totalorder %s19, 1
      %p84 = por %p82, %p83
      %p86 = scmp.ne.s32.totalorder %s69, %s85
      %p87 = scmp.eq.s32.totalorder %s19, 0
      %p88 = por %p86, %p87
      %p89 = scmp.le.s32.totalorder 1, %s13
      %p90 = scmp.lt.s32.totalorder %s13, 3
      %p91 = pnand %p89, %p90
      %p92 = pneg %p91
      // Predicated region
      $region9: #{tpu_custom_call.1} parent=5 // pred_check
        _
      $region10: #{tpu_custom_call.1} parent=5 // pred_check_branch
        %94 = sbr.rel (%p91) target = $region12
      $region11: #{tpu_custom_call.1} parent=5 // pred_region
        %s95 = ssub.s32 %s13, 1
      $region12: #{tpu_custom_call.1} parent=5 // pred_fallthru
        _
      %p96 = scmp.lt.s32.totalorder %s13, 2
      // Predicated region
      $region13: #{tpu_custom_call.1} parent=5 // pred_check
        %p97 = pneg %p96
      $region14: #{tpu_custom_call.1} parent=5 // pred_check_branch
        %99 = sbr.rel (%p97) target = $region16
      $region15: #{tpu_custom_call.1} parent=5 // pred_region
        // Predicated region
        $region17: #{tpu_custom_call.1} parent=15 // pred_check
          %p100 = pneg %p47
        $region18: #{tpu_custom_call.1} parent=15 // pred_check_branch
          %102 = sbr.rel (%p100) target = $region20
        $region19: #{tpu_custom_call.1} parent=15 // pred_region
          %s103 = sand.u32 %s37, 1
          %s104 = scalar_lea.sflag [#allocation3], %s103
          %s105 = sand.u32 %s37, 1
          %s106 = smul.addr %s105, 4
          %s107 = scalar_lea.vmem [#allocation2], %s106
          %109 = vsyncadd %s104, 0
          %s110 = smul.addr %s20, 2
          %s111 = sadd.s32 %s21, %s110
          %s112 = smul.addr %s111, 2
          %s113 = scalar_lea.hbm %s0, %s112
          %s114 = sshll.u32 %s113, 4
          %s115 = int_to_ptr.hbm [resolvable:$true] %s114
          %s116 = sshll.u32 %s107, 4
          %s117 = int_to_ptr.vmem [resolvable:$true] %s116
          %122 = dma.hbm_to_vmem [thread:$0]  %s115, 64, %s117, %s104, 32, 32, 2
        $region20: #{tpu_custom_call.1} parent=15 // pred_fallthru
          _
      $region16: #{tpu_custom_call.1} parent=5 // pred_fallthru
        _
      %p123 = scmp.le.s32.totalorder 1, %s13
      %p124 = scmp.lt.s32.totalorder %s13, 3
      %p125 = pnand %p123, %p124
      %p126 = pneg %p125
      // Predicated region
      $region21: #{tpu_custom_call.1} parent=5 // pred_check
        _
      $region22: #{tpu_custom_call.1} parent=5 // pred_check_branch
        %128 = sbr.rel (%p125) target = $region24
      $region23: #{tpu_custom_call.1} parent=5 // pred_region
        %s129 = ssub.s32 %s13, 1
        %s130 = sand.u32 %s40, 1
        %s131 = scalar_lea.sflag [#allocation3], %s130
        %s132 = sand.u32 %s40, 1
        %s133 = smul.addr %s132, 4
        %s134 = scalar_lea.vmem [#allocation2], %s133
        // Predicated region
        $region25: #{tpu_custom_call.1} parent=23 // pred_check
          %p135 = pneg %p53
        $region26: #{tpu_custom_call.1} parent=23 // pred_check_branch
          %137 = sbr.rel (%p135) target = $region28
        $region27: #{tpu_custom_call.1} parent=23 // pred_region
          %139 = dma.done %s131, 64
        $region28: #{tpu_custom_call.1} parent=23 // pred_fallthru
          _
        %s140 = sand.u32 %s40, 1
        %s141 = scalar_lea.sflag [#allocation3], %s140
        %s142 = sand.u32 %s40, 1
        %s143 = smul.addr %s142, 4
        %s144 = scalar_lea.vmem [#allocation2], %s143
        %p145 = pneg %p53
        %p146 = pneg %p50
        %p147 = pneg %p81
        %p148 = pneg %p78
        %s149 = sand.u32 %s68, 1
        %s150 = scalar_lea.sflag [#allocation4], %s149
        %s151 = sand.u32 %s68, 1
        %s152 = smul.addr %s151, 40
        %s153 = scalar_lea.vmem [#allocation5], %s152
        %v154 = vld [vmem:[%s134] sm:$0x3]
        %v155 = vld [vmem:[%s134 + $0x2] sm:$0x3]
        %v156 = vmul.f32 %v154, 3.1415927
        %v157 = vmul.f32 %v155, 3.1415927
        %v158 = vand.u32 2147483647, %v156
        %vm159 = vcmp.le.f32.partialorder %v158, 0.7853982
        %vm160 = vcmp.lt.s32.totalorder %v156, 0
        %v161 = vand.u32 %v156, 2139095040
        %v162 = vshrl.u32 %v161, 23
        %v163 = vsub.s32 %v162, 127
        %v164 = vand.u32 2147483647, %v156
        %v165 = vand.u32 %v164, 8388607
        %v166 = vor.u32 %v165, 8388608
        %v167 = vsub.s32 0, %v166
        %v168 = vadd.s32 %v163, 1
        %vm169 = vcmp.gt.s32.totalorder %v168, 0
        %v170 = vsel %vm169, %v168, 0
        %v171 = vshrl.u32 %v170, 5
        %v172 = vand.u32 %v170, 31
        %v173 = vsub.s32 32, %v172
        %v174 = vshrl.u32 683565275, %v173
        %v175 = vshll.u32 683565275, %v172
        %v176 = vshrl.u32 2475754826, %v173
        %v177 = vor.u32 %v175, %v176
        %v178 = vshll.u32 2475754826, %v172
        %v179 = vshrl.u32 2131351028, %v173
        %v180 = vor.u32 %v178, %v179
        %v181 = vshll.u32 2131351028, %v172
        %v182 = vshrl.u32 2102212464, %v173
        %v183 = vor.u32 %v181, %v182
        %v184 = vshll.u32 2102212464, %v172
        %v185 = vshrl.u32 920167782, %v173
        %v186 = vor.u32 %v184, %v185
        %v187 = vshll.u32 920167782, %v172
        %v188 = vshrl.u32 1326507024, %v173
        %v189 = vor.u32 %v187, %v188
        %vm190 = vcmp.lt.s32.totalorder %v171, 1
        %vm191 = vcmp.lt.s32.totalorder %v171, 2
        %vm192 = vcmp.lt.s32.totalorder %v171, 3
        %vm193 = vcmp.lt.s32.totalorder %v171, 4
        %v194 = vsel %vm190, %v174, %v177
        %v195 = vsel %vm193, %v183, 2102212464
        %v196 = vsel %vm192, %v180, %v195
        %v197 = vsel %vm191, %v194, %v196
        %v198 = vsel %vm190, %v177, %v180
        %v199 = vsel %vm193, %v186, 920167782
        %v200 = vsel %vm192, %v183, %v199
        %v201 = vsel %vm191, %v198, %v200
        %v202 = vsel %vm190, %v180, %v183
        %v203 = vsel %vm193, %v189, 1326507024
        %v204 = vsel %vm192, %v186, %v203
        %v205 = vsel %vm191, %v202, %v204
        %v206 = vshll.u32 %v166, 8
        %v207 = vand.u32 %v206, 65535
        %v208 = vshrl.u32 %v206, 16
        %v209 = vand.u32 %v205, 65535
        %v210 = vshrl.u32 %v205, 16
        %v211 = vmul.u32 %v207, %v209
        %v212 = vmul.u32 %v207, %v210
        %v213 = vmul.u32 %v208, %v209
        %v214 = vmul.u32 %v208, %v210
        %v215 = vshll.u32 %v212, 16
        %v216 = vshrl.u32 %v212, 16
        %v217 = vshll.u32 %v213, 16
        %v218 = vshrl.u32 %v213, 16
        %vm219 = vc.u32 %v211, %v215
        %v220 = vsel %vm219, 1, 0
        %v221 = vadd.s32 %v211, %v215
        %v222 = vadd.s32 %v214, %v220
        %vm223 = vc.u32 %v221, %v217
        %v224 = vsel %vm223, 1, 0
        %v225 = vadd.s32 %v221, %v217
        %v226 = vadd.s32 %v222, %v224
        %v227 = vadd.s32 %v226, %v216
        %v228 = vadd.s32 %v227, %v218
        %v229 = vand.u32 %v206, 65535
        %v230 = vshrl.u32 %v206, 16
        %v231 = vand.u32 %v201, 65535
        %v232 = vshrl.u32 %v201, 16
        %v233 = vmul.u32 %v229, %v231
        %v234 = vmul.u32 %v229, %v232
        %v235 = vmul.u32 %v230, %v231
        %v236 = vmul.u32 %v230, %v232
        %v237 = vshll.u32 %v234, 16
        %v238 = vshrl.u32 %v234, 16
        %v239 = vshll.u32 %v235, 16
        %v240 = vshrl.u32 %v235, 16
        %vm241 = vc.u32 %v233, %v237
        %v242 = vsel %vm241, 1, 0
        %v243 = vadd.s32 %v233, %v237
        %v244 = vadd.s32 %v236, %v242
        %vm245 = vc.u32 %v243, %v239
        %v246 = vsel %vm245, 1, 0
        %v247 = vadd.s32 %v243, %v239
        %v248 = vadd.s32 %v244, %v246
        %v249 = vadd.s32 %v248, %v238
        %v250 = vadd.s32 %v249, %v240
        %v251 = vmul.u32 %v206, %v197
        %v252 = vadd.s32 %v228, %v247
        %vm253 = vc.u32 %v228, %v247
        %v254 = vadd.s32 %v250, 1
        %v255 = vsel %vm253, %v254, %v250
        %v256 = vadd.s32 %v251, %v255
        %v257 = vadd.s32 %v256, 536870912
        %v258 = vshrl.u32 %v257, 30
        %v259 = vshll.u32 %v258, 30
        %v260 = vsub.s32 %v256, %v259
        %vm261 = vcmp.lt.s32.totalorder %v260, 0
        %v262 = vsub.s32 0, %v260
        %v263 = vsel %vm261, %v262, %v260
        %v264 = vclz %v263
        %v265 = vsub.s32 %v264, 2
        %vm266 = vcmp.gt.s32.totalorder 0, %v265
        %v267 = vsel %vm266, 0, %v265
        %v268 = vsub.s32 32, %v267
        %v269 = vshll.u32 %v260, %v267
        %v270 = vshrl.u32 %v252, %v268
        %v271 = vor.u32 %v269, %v270
        %v272 = vsub.s32 4294967266, %v267
        %v273 = vadd.s32 %v272, 127
        %v274 = vshll.u32 %v273, 23
        %v275 = vor.u32 4788187, %v274
        %v276 = vand.u32 2147483647, %v275
        %v278 = vcvt.s32.f32 %v271
        %v279 = vmul.f32 %v278, %v276
        %v280 = vxor.u32 %v279, 2147483648
        %v281 = vsel %vm160, %v280, %v279
        %v282 = vsub.s32 4, %v258
        %v283 = vsel %vm160, %v282, %v258
        %v284 = vsel %vm159, %v156, %v281
        %v285 = vsel %vm159, 0, %v283
        %v286 = vmul.f32 %v284, %v284
        %v287 = vmul.f32 %v286, -0.001358992
        %v288 = vadd.f32 %v287, 0.041655596
        %v289 = vmul.f32 %v286, %v288
        %v290 = vadd.f32 %v289, -0.4999988
        %v291 = vmul.f32 %v286, %v290
        %v292 = vadd.f32 1.0, %v291
        %v293 = vmul.f32 %v284, %v284
        %v294 = vmul.f32 %v293, -0.00019511016
        %v295 = vadd.f32 %v294, 0.008332121
        %v296 = vmul.f32 %v293, %v295
        %v297 = vadd.f32 %v296, -0.16666654
        %v298 = vmul.f32 %v293, %v297
        %v299 = vadd.f32 %v298, 1.0
        %v300 = vmul.f32 %v299, %v284
        %vm301 = vweird.f32 %v156
        %v302 = vadd.s32 %v285, 3
        %v303 = vand.u32 %v302, 3
        %vm304 = vcmp.lt.s32.totalorder %v303, 2
        %vm305 = vcmp.eq.s32.totalorder %v303, 0
        %v306 = vxor.u32 %v300, 2147483648
        %v307 = vsel %vm305, %v292, %v306
        %vm308 = vcmp.eq.s32.totalorder %v303, 2
        %v309 = vxor.u32 %v292, 2147483648
        %v310 = vsel %vm308, %v309, %v300
        %v311 = vsel %vm304, %v307, %v310
        %v312 = vsel %vm301, nan, %v311
        %v313 = vand.u32 2147483647, %v157
        %vm314 = vcmp.le.f32.partialorder %v313, 0.7853982
        %vm315 = vcmp.lt.s32.totalorder %v157, 0
        %v316 = vand.u32 %v157, 2139095040
        %v317 = vshrl.u32 %v316, 23
        %v318 = vsub.s32 %v317, 127
        %v319 = vand.u32 2147483647, %v157
        %v320 = vand.u32 %v319, 8388607
        %v321 = vor.u32 %v320, 8388608
        %v322 = vsub.s32 0, %v321
        %v323 = vadd.s32 %v318, 1
        %vm324 = vcmp.gt.s32.totalorder %v323, 0
        %v325 = vsel %vm324, %v323, 0
        %v326 = vshrl.u32 %v325, 5
        %v327 = vand.u32 %v325, 31
        %v328 = vsub.s32 32, %v327
        %v329 = vshrl.u32 683565275, %v328
        %v330 = vshll.u32 683565275, %v327
        %v331 = vshrl.u32 2475754826, %v328
        %v332 = vor.u32 %v330, %v331
        %v333 = vshll.u32 2475754826, %v327
        %v334 = vshrl.u32 2131351028, %v328
        %v335 = vor.u32 %v333, %v334
        %v336 = vshll.u32 2131351028, %v327
        %v337 = vshrl.u32 2102212464, %v328
        %v338 = vor.u32 %v336, %v337
        %v339 = vshll.u32 2102212464, %v327
        %v340 = vshrl.u32 920167782, %v328
        %v341 = vor.u32 %v339, %v340
        %v342 = vshll.u32 920167782, %v327
        %v343 = vshrl.u32 1326507024, %v328
        %v344 = vor.u32 %v342, %v343
        %vm345 = vcmp.lt.s32.totalorder %v326, 1
        %vm346 = vcmp.lt.s32.totalorder %v326, 2
        %vm347 = vcmp.lt.s32.totalorder %v326, 3
        %vm348 = vcmp.lt.s32.totalorder %v326, 4
        %v349 = vsel %vm345, %v329, %v332
        %v350 = vsel %vm348, %v338, 2102212464
        %v351 = vsel %vm347, %v335, %v350
        %v352 = vsel %vm346, %v349, %v351
        %v353 = vsel %vm345, %v332, %v335
        %v354 = vsel %vm348, %v341, 920167782
        %v355 = vsel %vm347, %v338, %v354
        %v356 = vsel %vm346, %v353, %v355
        %v357 = vsel %vm345, %v335, %v338
        %v358 = vsel %vm348, %v344, 1326507024
        %v359 = vsel %vm347, %v341, %v358
        %v360 = vsel %vm346, %v357, %v359
        %v361 = vshll.u32 %v321, 8
        %v362 = vand.u32 %v361, 65535
        %v363 = vshrl.u32 %v361, 16
        %v364 = vand.u32 %v360, 65535
        %v365 = vshrl.u32 %v360, 16
        %v366 = vmul.u32 %v362, %v364
        %v367 = vmul.u32 %v362, %v365
        %v368 = vmul.u32 %v363, %v364
        %v369 = vmul.u32 %v363, %v365
        %v370 = vshll.u32 %v367, 16
        %v371 = vshrl.u32 %v367, 16
        %v372 = vshll.u32 %v368, 16
        %v373 = vshrl.u32 %v368, 16
        %vm374 = vc.u32 %v366, %v370
        %v375 = vsel %vm374, 1, 0
        %v376 = vadd.s32 %v366, %v370
        %v377 = vadd.s32 %v369, %v375
        %vm378 = vc.u32 %v376, %v372
        %v379 = vsel %vm378, 1, 0
        %v380 = vadd.s32 %v376, %v372
        %v381 = vadd.s32 %v377, %v379
        %v382 = vadd.s32 %v381, %v371
        %v383 = vadd.s32 %v382, %v373
        %v384 = vand.u32 %v361, 65535
        %v385 = vshrl.u32 %v361, 16
        %v386 = vand.u32 %v356, 65535
        %v387 = vshrl.u32 %v356, 16
        %v388 = vmul.u32 %v384, %v386
        %v389 = vmul.u32 %v384, %v387
        %v390 = vmul.u32 %v385, %v386
        %v391 = vmul.u32 %v385, %v387
        %v392 = vshll.u32 %v389, 16
        %v393 = vshrl.u32 %v389, 16
        %v394 = vshll.u32 %v390, 16
        %v395 = vshrl.u32 %v390, 16
        %vm396 = vc.u32 %v388, %v392
        %v397 = vsel %vm396, 1, 0
        %v398 = vadd.s32 %v388, %v392
        %v399 = vadd.s32 %v391, %v397
        %vm400 = vc.u32 %v398, %v394
        %v401 = vsel %vm400, 1, 0
        %v402 = vadd.s32 %v398, %v394
        %v403 = vadd.s32 %v399, %v401
        %v404 = vadd.s32 %v403, %v393
        %v405 = vadd.s32 %v404, %v395
        %v406 = vmul.u32 %v361, %v352
        %v407 = vadd.s32 %v383, %v402
        %vm408 = vc.u32 %v383, %v402
        %v409 = vadd.s32 %v405, 1
        %v410 = vsel %vm408, %v409, %v405
        %v411 = vadd.s32 %v406, %v410
        %v412 = vadd.s32 %v411, 536870912
        %v413 = vshrl.u32 %v412, 30
        %v414 = vshll.u32 %v413, 30
        %v415 = vsub.s32 %v411, %v414
        %vm416 = vcmp.lt.s32.totalorder %v415, 0
        %v417 = vsub.s32 0, %v415
        %v418 = vsel %vm416, %v417, %v415
        %v419 = vclz %v418
        %v420 = vsub.s32 %v419, 2
        %vm421 = vcmp.gt.s32.totalorder 0, %v420
        %v422 = vsel %vm421, 0, %v420
        %v423 = vsub.s32 32, %v422
        %v424 = vshll.u32 %v415, %v422
        %v425 = vshrl.u32 %v407, %v423
        %v426 = vor.u32 %v424, %v425
        %v427 = vsub.s32 4294967266, %v422
        %v428 = vadd.s32 %v427, 127
        %v429 = vshll.u32 %v428, 23
        %v430 = vor.u32 4788187, %v429
        %v431 = vand.u32 2147483647, %v430
        %v433 = vcvt.s32.f32 %v426
        %v434 = vmul.f32 %v433, %v431
        %v435 = vxor.u32 %v434, 2147483648
        %v436 = vsel %vm315, %v435, %v434
        %v437 = vsub.s32 4, %v413
        %v438 = vsel %vm315, %v437, %v413
        %v439 = vsel %vm314, %v157, %v436
        %v440 = vsel %vm314, 0, %v438
        %v441 = vmul.f32 %v439, %v439
        %v442 = vmul.f32 %v441, -0.001358992
        %v443 = vadd.f32 %v442, 0.041655596
        %v444 = vmul.f32 %v441, %v443
        %v445 = vadd.f32 %v444, -0.4999988
        %v446 = vmul.f32 %v441, %v445
        %v447 = vadd.f32 1.0, %v446
        %v448 = vmul.f32 %v439, %v439
        %v449 = vmul.f32 %v448, -0.00019511016
        %v450 = vadd.f32 %v449, 0.008332121
        %v451 = vmul.f32 %v448, %v450
        %v452 = vadd.f32 %v451, -0.16666654
        %v453 = vmul.f32 %v448, %v452
        %v454 = vadd.f32 %v453, 1.0
        %v455 = vmul.f32 %v454, %v439
        %vm456 = vweird.f32 %v157
        %v457 = vadd.s32 %v440, 3
        %v458 = vand.u32 %v457, 3
        %vm459 = vcmp.lt.s32.totalorder %v458, 2
        %vm460 = vcmp.eq.s32.totalorder %v458, 0
        %v461 = vxor.u32 %v455, 2147483648
        %v462 = vsel %vm460, %v447, %v461
        %vm463 = vcmp.eq.s32.totalorder %v458, 2
        %v464 = vxor.u32 %v447, 2147483648
        %v465 = vsel %vm463, %v464, %v455
        %v466 = vsel %vm459, %v462, %v465
        %v467 = vsel %vm456, nan, %v466
        %v468 = vand.u32 2147483647, %v156
        %vm469 = vcmp.le.f32.partialorder %v468, 0.7853982
        %vm470 = vcmp.lt.s32.totalorder %v156, 0
        %v471 = vand.u32 %v156, 2139095040
        %v472 = vshrl.u32 %v471, 23
        %v473 = vsub.s32 %v472, 127
        %v474 = vand.u32 2147483647, %v156
        %v475 = vand.u32 %v474, 8388607
        %v476 = vor.u32 %v475, 8388608
        %v477 = vsub.s32 0, %v476
        %v478 = vadd.s32 %v473, 1
        %vm479 = vcmp.gt.s32.totalorder %v478, 0
        %v480 = vsel %vm479, %v478, 0
        %v481 = vshrl.u32 %v480, 5
        %v482 = vand.u32 %v480, 31
        %v483 = vsub.s32 32, %v482
        %v484 = vshrl.u32 683565275, %v483
        %v485 = vshll.u32 683565275, %v482
        %v486 = vshrl.u32 2475754826, %v483
        %v487 = vor.u32 %v485, %v486
        %v488 = vshll.u32 2475754826, %v482
        %v489 = vshrl.u32 2131351028, %v483
        %v490 = vor.u32 %v488, %v489
        %v491 = vshll.u32 2131351028, %v482
        %v492 = vshrl.u32 2102212464, %v483
        %v493 = vor.u32 %v491, %v492
        %v494 = vshll.u32 2102212464, %v482
        %v495 = vshrl.u32 920167782, %v483
        %v496 = vor.u32 %v494, %v495
        %v497 = vshll.u32 920167782, %v482
        %v498 = vshrl.u32 1326507024, %v483
        %v499 = vor.u32 %v497, %v498
        %vm500 = vcmp.lt.s32.totalorder %v481, 1
        %vm501 = vcmp.lt.s32.totalorder %v481, 2
        %vm502 = vcmp.lt.s32.totalorder %v481, 3
        %vm503 = vcmp.lt.s32.totalorder %v481, 4
        %v504 = vsel %vm500, %v484, %v487
        %v505 = vsel %vm503, %v493, 2102212464
        %v506 = vsel %vm502, %v490, %v505
        %v507 = vsel %vm501, %v504, %v506
        %v508 = vsel %vm500, %v487, %v490
        %v509 = vsel %vm503, %v496, 920167782
        %v510 = vsel %vm502, %v493, %v509
        %v511 = vsel %vm501, %v508, %v510
        %v512 = vsel %vm500, %v490, %v493
        %v513 = vsel %vm503, %v499, 1326507024
        %v514 = vsel %vm502, %v496, %v513
        %v515 = vsel %vm501, %v512, %v514
        %v516 = vshll.u32 %v476, 8
        %v517 = vand.u32 %v516, 65535
        %v518 = vshrl.u32 %v516, 16
        %v519 = vand.u32 %v515, 65535
        %v520 = vshrl.u32 %v515, 16
        %v521 = vmul.u32 %v517, %v519
        %v522 = vmul.u32 %v517, %v520
        %v523 = vmul.u32 %v518, %v519
        %v524 = vmul.u32 %v518, %v520
        %v525 = vshll.u32 %v522, 16
        %v526 = vshrl.u32 %v522, 16
        %v527 = vshll.u32 %v523, 16
        %v528 = vshrl.u32 %v523, 16
        %vm529 = vc.u32 %v521, %v525
        %v530 = vsel %vm529, 1, 0
        %v531 = vadd.s32 %v521, %v525
        %v532 = vadd.s32 %v524, %v530
        %vm533 = vc.u32 %v531, %v527
        %v534 = vsel %vm533, 1, 0
        %v535 = vadd.s32 %v531, %v527
        %v536 = vadd.s32 %v532, %v534
        %v537 = vadd.s32 %v536, %v526
        %v538 = vadd.s32 %v537, %v528
        %v539 = vand.u32 %v516, 65535
        %v540 = vshrl.u32 %v516, 16
        %v541 = vand.u32 %v511, 65535
        %v542 = vshrl.u32 %v511, 16
        %v543 = vmul.u32 %v539, %v541
        %v544 = vmul.u32 %v539, %v542
        %v545 = vmul.u32 %v540, %v541
        %v546 = vmul.u32 %v540, %v542
        %v547 = vshll.u32 %v544, 16
        %v548 = vshrl.u32 %v544, 16
        %v549 = vshll.u32 %v545, 16
        %v550 = vshrl.u32 %v545, 16
        %vm551 = vc.u32 %v543, %v547
        %v552 = vsel %vm551, 1, 0
        %v553 = vadd.s32 %v543, %v547
        %v554 = vadd.s32 %v546, %v552
        %vm555 = vc.u32 %v553, %v549
        %v556 = vsel %vm555, 1, 0
        %v557 = vadd.s32 %v553, %v549
        %v558 = vadd.s32 %v554, %v556
        %v559 = vadd.s32 %v558, %v548
        %v560 = vadd.s32 %v559, %v550
        %v561 = vmul.u32 %v516, %v507
        %v562 = vadd.s32 %v538, %v557
        %vm563 = vc.u32 %v538, %v557
        %v564 = vadd.s32 %v560, 1
        %v565 = vsel %vm563, %v564, %v560
        %v566 = vadd.s32 %v561, %v565
        %v567 = vadd.s32 %v566, 536870912
        %v568 = vshrl.u32 %v567, 30
        %v569 = vshll.u32 %v568, 30
        %v570 = vsub.s32 %v566, %v569
        %vm571 = vcmp.lt.s32.totalorder %v570, 0
        %v572 = vsub.s32 0, %v570
        %v573 = vsel %vm571, %v572, %v570
        %v574 = vclz %v573
        %v575 = vsub.s32 %v574, 2
        %vm576 = vcmp.gt.s32.totalorder 0, %v575
        %v577 = vsel %vm576, 0, %v575
        %v578 = vsub.s32 32, %v577
        %v579 = vshll.u32 %v570, %v577
        %v580 = vshrl.u32 %v562, %v578
        %v581 = vor.u32 %v579, %v580
        %v582 = vsub.s32 4294967266, %v577
        %v583 = vadd.s32 %v582, 127
        %v584 = vshll.u32 %v583, 23
        %v585 = vor.u32 4788187, %v584
        %v586 = vand.u32 2147483647, %v585
        %v588 = vcvt.s32.f32 %v581
        %v589 = vmul.f32 %v588, %v586
        %v590 = vxor.u32 %v589, 2147483648
        %v591 = vsel %vm470, %v590, %v589
        %v592 = vsub.s32 4, %v568
        %v593 = vsel %vm470, %v592, %v568
        %v594 = vsel %vm469, %v156, %v591
        %v595 = vsel %vm469, 0, %v593
        %v596 = vmul.f32 %v594, %v594
        %v597 = vmul.f32 %v596, -0.001358992
        %v598 = vadd.f32 %v597, 0.041655596
        %v599 = vmul.f32 %v596, %v598
        %v600 = vadd.f32 %v599, -0.4999988
        %v601 = vmul.f32 %v596, %v600
        %v602 = vadd.f32 1.0, %v601
        %v603 = vmul.f32 %v594, %v594
        %v604 = vmul.f32 %v603, -0.00019511016
        %v605 = vadd.f32 %v604, 0.008332121
        %v606 = vmul.f32 %v603, %v605
        %v607 = vadd.f32 %v606, -0.16666654
        %v608 = vmul.f32 %v603, %v607
        %v609 = vadd.f32 %v608, 1.0
        %v610 = vmul.f32 %v609, %v594
        %vm611 = vweird.f32 %v156
        %v612 = vand.u32 %v595, 3
        %vm613 = vcmp.lt.s32.totalorder %v612, 2
        %vm614 = vcmp.eq.s32.totalorder %v612, 0
        %v615 = vxor.u32 %v610, 2147483648
        %v616 = vsel %vm614, %v602, %v615
        %vm617 = vcmp.eq.s32.totalorder %v612, 2
        %v618 = vxor.u32 %v602, 2147483648
        %v619 = vsel %vm617, %v618, %v610
        %v620 = vsel %vm613, %v616, %v619
        %v621 = vsel %vm611, nan, %v620
        %v622 = vand.u32 2147483647, %v157
        %vm623 = vcmp.le.f32.partialorder %v622, 0.7853982
        %vm624 = vcmp.lt.s32.totalorder %v157, 0
        %v625 = vand.u32 %v157, 2139095040
        %v626 = vshrl.u32 %v625, 23
        %v627 = vsub.s32 %v626, 127
        %v628 = vand.u32 2147483647, %v157
        %v629 = vand.u32 %v628, 8388607
        %v630 = vor.u32 %v629, 8388608
        %v631 = vsub.s32 0, %v630
        %v632 = vadd.s32 %v627, 1
        %vm633 = vcmp.gt.s32.totalorder %v632, 0
        %v634 = vsel %vm633, %v632, 0
        %v635 = vshrl.u32 %v634, 5
        %v636 = vand.u32 %v634, 31
        %v637 = vsub.s32 32, %v636
        %v638 = vshrl.u32 683565275, %v637
        %v639 = vshll.u32 683565275, %v636
        %v640 = vshrl.u32 2475754826, %v637
        %v641 = vor.u32 %v639, %v640
        %v642 = vshll.u32 2475754826, %v636
        %v643 = vshrl.u32 2131351028, %v637
        %v644 = vor.u32 %v642, %v643
        %v645 = vshll.u32 2131351028, %v636
        %v646 = vshrl.u32 2102212464, %v637
        %v647 = vor.u32 %v645, %v646
        %v648 = vshll.u32 2102212464, %v636
        %v649 = vshrl.u32 920167782, %v637
        %v650 = vor.u32 %v648, %v649
        %v651 = vshll.u32 920167782, %v636
        %v652 = vshrl.u32 1326507024, %v637
        %v653 = vor.u32 %v651, %v652
        %vm654 = vcmp.lt.s32.totalorder %v635, 1
        %vm655 = vcmp.lt.s32.totalorder %v635, 2
        %vm656 = vcmp.lt.s32.totalorder %v635, 3
        %vm657 = vcmp.lt.s32.totalorder %v635, 4
        %v658 = vsel %vm654, %v638, %v641
        %v659 = vsel %vm657, %v647, 2102212464
        %v660 = vsel %vm656, %v644, %v659
        %v661 = vsel %vm655, %v658, %v660
        %v662 = vsel %vm654, %v641, %v644
        %v663 = vsel %vm657, %v650, 920167782
        %v664 = vsel %vm656, %v647, %v663
        %v665 = vsel %vm655, %v662, %v664
        %v666 = vsel %vm654, %v644, %v647
        %v667 = vsel %vm657, %v653, 1326507024
        %v668 = vsel %vm656, %v650, %v667
        %v669 = vsel %vm655, %v666, %v668
        %v670 = vshll.u32 %v630, 8
        %v671 = vand.u32 %v670, 65535
        %v672 = vshrl.u32 %v670, 16
        %v673 = vand.u32 %v669, 65535
        %v674 = vshrl.u32 %v669, 16
        %v675 = vmul.u32 %v671, %v673
        %v676 = vmul.u32 %v671, %v674
        %v677 = vmul.u32 %v672, %v673
        %v678 = vmul.u32 %v672, %v674
        %v679 = vshll.u32 %v676, 16
        %v680 = vshrl.u32 %v676, 16
        %v681 = vshll.u32 %v677, 16
        %v682 = vshrl.u32 %v677, 16
        %vm683 = vc.u32 %v675, %v679
        %v684 = vsel %vm683, 1, 0
        %v685 = vadd.s32 %v675, %v679
        %v686 = vadd.s32 %v678, %v684
        %vm687 = vc.u32 %v685, %v681
        %v688 = vsel %vm687, 1, 0
        %v689 = vadd.s32 %v685, %v681
        %v690 = vadd.s32 %v686, %v688
        %v691 = vadd.s32 %v690, %v680
        %v692 = vadd.s32 %v691, %v682
        %v693 = vand.u32 %v670, 65535
        %v694 = vshrl.u32 %v670, 16
        %v695 = vand.u32 %v665, 65535
        %v696 = vshrl.u32 %v665, 16
        %v697 = vmul.u32 %v693, %v695
        %v698 = vmul.u32 %v693, %v696
        %v699 = vmul.u32 %v694, %v695
        %v700 = vmul.u32 %v694, %v696
        %v701 = vshll.u32 %v698, 16
        %v702 = vshrl.u32 %v698, 16
        %v703 = vshll.u32 %v699, 16
        %v704 = vshrl.u32 %v699, 16
        %vm705 = vc.u32 %v697, %v701
        %v706 = vsel %vm705, 1, 0
        %v707 = vadd.s32 %v697, %v701
        %v708 = vadd.s32 %v700, %v706
        %vm709 = vc.u32 %v707, %v703
        %v710 = vsel %vm709, 1, 0
        %v711 = vadd.s32 %v707, %v703
        %v712 = vadd.s32 %v708, %v710
        %v713 = vadd.s32 %v712, %v702
        %v714 = vadd.s32 %v713, %v704
        %v715 = vmul.u32 %v670, %v661
        %v716 = vadd.s32 %v692, %v711
        %vm717 = vc.u32 %v692, %v711
        %v718 = vadd.s32 %v714, 1
        %v719 = vsel %vm717, %v718, %v714
        %v720 = vadd.s32 %v715, %v719
        %v721 = vadd.s32 %v720, 536870912
        %v722 = vshrl.u32 %v721, 30
        %v723 = vshll.u32 %v722, 30
        %v724 = vsub.s32 %v720, %v723
        %vm725 = vcmp.lt.s32.totalorder %v724, 0
        %v726 = vsub.s32 0, %v724
        %v727 = vsel %vm725, %v726, %v724
        %v728 = vclz %v727
        %v729 = vsub.s32 %v728, 2
        %vm730 = vcmp.gt.s32.totalorder 0, %v729
        %v731 = vsel %vm730, 0, %v729
        %v732 = vsub.s32 32, %v731
        %v733 = vshll.u32 %v724, %v731
        %v734 = vshrl.u32 %v716, %v732
        %v735 = vor.u32 %v733, %v734
        %v736 = vsub.s32 4294967266, %v731
        %v737 = vadd.s32 %v736, 127
        %v738 = vshll.u32 %v737, 23
        %v739 = vor.u32 4788187, %v738
        %v740 = vand.u32 2147483647, %v739
        %v742 = vcvt.s32.f32 %v735
        %v743 = vmul.f32 %v742, %v740
        %v744 = vxor.u32 %v743, 2147483648
        %v745 = vsel %vm624, %v744, %v743
        %v746 = vsub.s32 4, %v722
        %v747 = vsel %vm624, %v746, %v722
        %v748 = vsel %vm623, %v157, %v745
        %v749 = vsel %vm623, 0, %v747
        %v750 = vmul.f32 %v748, %v748
        %v751 = vmul.f32 %v750, -0.001358992
        %v752 = vadd.f32 %v751, 0.041655596
        %v753 = vmul.f32 %v750, %v752
        %v754 = vadd.f32 %v753, -0.4999988
        %v755 = vmul.f32 %v750, %v754
        %v756 = vadd.f32 1.0, %v755
        %v757 = vmul.f32 %v748, %v748
        %v758 = vmul.f32 %v757, -0.00019511016
        %v759 = vadd.f32 %v758, 0.008332121
        %v760 = vmul.f32 %v757, %v759
        %v761 = vadd.f32 %v760, -0.16666654
        %v762 = vmul.f32 %v757, %v761
        %v763 = vadd.f32 %v762, 1.0
        %v764 = vmul.f32 %v763, %v748
        %vm765 = vweird.f32 %v157
        %v766 = vand.u32 %v749, 3
        %vm767 = vcmp.lt.s32.totalorder %v766, 2
        %vm768 = vcmp.eq.s32.totalorder %v766, 0
        %v769 = vxor.u32 %v764, 2147483648
        %v770 = vsel %vm768, %v756, %v769
        %vm771 = vcmp.eq.s32.totalorder %v766, 2
        %v772 = vxor.u32 %v756, 2147483648
        %v773 = vsel %vm771, %v772, %v764
        %v774 = vsel %vm767, %v770, %v773
        %v775 = vsel %vm765, nan, %v774
        %v776 = vmul.f32 %v312, 2.0
        %v777 = vmul.f32 %v467, 2.0
        %v778 = vmul.f32 %v776, %v621
        %v779 = vmul.f32 %v777, %v775
        %v780 = vmul.f32 %v621, %v621
        %v781 = vmul.f32 %v775, %v775
        %v782 = vmul.f32 %v312, %v312
        %v783 = vmul.f32 %v467, %v467
        %v784 = vsub.f32 %v780, %v782
        %v785 = vsub.f32 %v781, %v783
        %v786 = vmul.f32 %v778, 2.0
        %v787 = vmul.f32 %v779, 2.0
        %v788 = vmul.f32 %v786, %v784
        %v789 = vmul.f32 %v787, %v785
        %v790 = vmul.f32 %v784, %v784
        %v791 = vmul.f32 %v785, %v785
        %v792 = vmul.f32 %v778, %v778
        %v793 = vmul.f32 %v779, %v779
        %v794 = vsub.f32 %v790, %v792
        %v795 = vsub.f32 %v791, %v793
        %v796 = vmul.f32 %v788, 2.0
        %v797 = vmul.f32 %v789, 2.0
        %v798 = vmul.f32 %v796, %v794
        %v799 = vmul.f32 %v797, %v795
        %v800 = vmul.f32 %v794, %v794
        %v801 = vmul.f32 %v795, %v795
        %v802 = vmul.f32 %v788, %v788
        %v803 = vmul.f32 %v789, %v789
        %v804 = vsub.f32 %v800, %v802
        %v805 = vsub.f32 %v801, %v803
        %v806 = vmul.f32 %v798, 2.0
        %v807 = vmul.f32 %v799, 2.0
        %v808 = vmul.f32 %v806, %v804
        %v809 = vmul.f32 %v807, %v805
        %v810 = vmul.f32 %v804, %v804
        %v811 = vmul.f32 %v805, %v805
        %v812 = vmul.f32 %v798, %v798
        %v813 = vmul.f32 %v799, %v799
        %v814 = vsub.f32 %v810, %v812
        %v815 = vsub.f32 %v811, %v813
        %816 = vst [vmem:[%s153] sm:$0x3] %v312
        %817 = vst [vmem:[%s153 + $0x2] sm:$0x3] %v467
        %818 = vst [vmem:[%s153 + $0x4] sm:$0x3] %v621
        %819 = vst [vmem:[%s153 + $0x6] sm:$0x3] %v775
        %820 = vst [vmem:[%s153 + $0x8] sm:$0x3] %v778
        %821 = vst [vmem:[%s153 + $0xa] sm:$0x3] %v779
        %822 = vst [vmem:[%s153 + $0xc] sm:$0x3] %v784
        %823 = vst [vmem:[%s153 + $0xe] sm:$0x3] %v785
        %824 = vst [vmem:[%s153 + $0x10] sm:$0x3] %v788
        %825 = vst [vmem:[%s153 + $0x12] sm:$0x3] %v789
        %826 = vst [vmem:[%s153 + $0x14] sm:$0x3] %v794
        %827 = vst [vmem:[%s153 + $0x16] sm:$0x3] %v795
        %828 = vst [vmem:[%s153 + $0x18] sm:$0x3] %v798
        %829 = vst [vmem:[%s153 + $0x1a] sm:$0x3] %v799
        %830 = vst [vmem:[%s153 + $0x1c] sm:$0x3] %v804
        %831 = vst [vmem:[%s153 + $0x1e] sm:$0x3] %v805
        %832 = vst [vmem:[%s153 + $0x20] sm:$0x3] %v808
        %833 = vst [vmem:[%s153 + $0x22] sm:$0x3] %v809
        %834 = vst [vmem:[%s153 + $0x24] sm:$0x3] %v814
        %835 = vst [vmem:[%s153 + $0x26] sm:$0x3] %v815
        %s836 = sand.u32 %s68, 1
        %s837 = scalar_lea.sflag [#allocation4], %s836
        %s838 = sand.u32 %s68, 1
        %s839 = smul.addr %s838, 40
        %s840 = scalar_lea.vmem [#allocation5], %s839
        // Predicated region
        $region29: #{tpu_custom_call.1} parent=23 // pred_check
          %p841 = pneg %p78
        $region30: #{tpu_custom_call.1} parent=23 // pred_check_branch
          %843 = sbr.rel (%p841) target = $region32
        $region31: #{tpu_custom_call.1} parent=23 // pred_region
          %845 = vsyncadd %s837, 0
          %s846 = smul.addr %s22, 20
          %s847 = sadd.s32 %s23, %s846
          %s848 = smul.addr %s847, 2
          %s849 = scalar_lea.hbm %s1, %s848
          %s850 = sshll.u32 %s840, 4
          %s851 = int_to_ptr.vmem [resolvable:$true] %s850
          %s852 = sshll.u32 %s849, 4
          %s853 = int_to_ptr.hbm [resolvable:$true] %s852
          %858 = dma.vmem_to_hbm [thread:$0]  %s851, 640, %s853, %s837, 32, 32, 2
        $region32: #{tpu_custom_call.1} parent=23 // pred_fallthru
          _
      $region24: #{tpu_custom_call.1} parent=5 // pred_fallthru
        _
      %p859 = scmp.le.s32.totalorder 2, %s13
      // Predicated region
      $region33: #{tpu_custom_call.1} parent=5 // pred_check
        %p860 = pneg %p859
      $region34: #{tpu_custom_call.1} parent=5 // pred_check_branch
        %862 = sbr.rel (%p860) target = $region36
      $region35: #{tpu_custom_call.1} parent=5 // pred_region
        %s863 = ssub.s32 %s13, 2
        // Predicated region
        $region37: #{tpu_custom_call.1} parent=35 // pred_check
          %p864 = pneg %p84
        $region38: #{tpu_custom_call.1} parent=35 // pred_check_branch
          %866 = sbr.rel (%p864) target = $region40
        $region39: #{tpu_custom_call.1} parent=35 // pred_region
          %s867 = sand.u32 %s69, 1
          %s868 = scalar_lea.sflag [#allocation4], %s867
          %s869 = sand.u32 %s69, 1
          %s870 = smul.addr %s869, 40
          %s871 = scalar_lea.vmem [#allocation5], %s870
          %873 = dma.done %s868, 640
        $region40: #{tpu_custom_call.1} parent=35 // pred_fallthru
          _
      $region36: #{tpu_custom_call.1} parent=5 // pred_fallthru
        _
    $region6: #{tpu_custom_call.1} parent=1 // loop_footer
      %s17 = sadd.s32 1, %s13
    $region7: #{tpu_custom_call.1} parent=1 // loop_footer_branch
      %12 = sbr.rel target = $region3
    $region8: #{tpu_custom_call.1} parent=1 // loop_exit
      _
    %874 = vsyncpa [#allocation3], 1
    %s875 = scalar_lea.sflag [#allocation3], 1
    %876 = vsyncpa %s875, 1
    %877 = vsyncpa [#allocation4], 1
    %s878 = scalar_lea.sflag [#allocation4], 1
    %879 = vsyncpa %s878, 1

</llo_original>
